<compile_context>
chip_gen: v6e
topology: v6e:2x2x1
jax: 0.10.0
libtpu: 0.0.40
codegen_flags: <defaults>
</compile_context>

<pallas_src>
import functools

import jax
import jax.numpy as jnp
from jax.experimental import pallas as pl
from jax.experimental.pallas import tpu as pltpu

HID = 128  # hidden width fixed by the module definition


def _shape_decoder_kernel(shape_ref, pos_ref, posp_ref, wh_ref, b_ref, wfc_ref,
                          out_ref, feat_ref):
    """Single-invocation kernel: everything resident in VMEM, no grid.

    shape_ref: (N, 128)   shape codes
    pos_ref:   (N, 3)     raw positional inputs
    posp_ref:  (4, 128)   rows 0..2 = Wp^T, row 3 = bp
    wh_ref:    (5,128,128) stacked W1^T..W5^T
    b_ref:     (6, 128)   rows 0..4 = b1..b5, row 5 = bfc (lane 0 real)
    wfc_ref:   (128, 128) Wfc^T zero-padded to 128 output lanes (col 0 real)
    out_ref:   (1, 128)   fc output slab (lane 0 real)
    feat_ref:  (1, 128)   feature_out (layer3 output)
    """
    f32 = jnp.float32

    # --- pos_emb_reshape_layer on the VPU: P = pos @ Wp^T + bp  (no MXU) ---
    pos = pos_ref[...]                                           # (N, 3)
    P = (pos[:, 0:1] * posp_ref[0:1, :]
         + pos[:, 1:2] * posp_ref[1:2, :]
         + pos[:, 2:3] * posp_ref[2:3, :]
         + posp_ref[3:4, :])                                     # (N, 128)

    # --- sample-axis means computed ONCE (mean-commutativity) ---
    p_mean = jnp.mean(P, axis=0, keepdims=True)                  # (1, 128)
    s_mean = jnp.mean(shape_ref[...], axis=0, keepdims=True)     # (1, 128)

    # --- serial layer chain: (1,128) add + (1,128)x(128,128) dot per layer ---
    f = s_mean + p_mean
    f = jnp.dot(f, wh_ref[0], preferred_element_type=f32) + b_ref[0:1, :]
    f = f + p_mean
    f = jnp.dot(f, wh_ref[1], preferred_element_type=f32) + b_ref[1:2, :]
    f = f + p_mean
    feat = jnp.dot(f, wh_ref[2], preferred_element_type=f32) + b_ref[2:3, :]
    feat_ref[...] = feat                                         # feature_out
    f = feat + p_mean
    f = jnp.dot(f, wh_ref[3], preferred_element_type=f32) + b_ref[3:4, :]
    f = f + p_mean
    f = jnp.dot(f, wh_ref[4], preferred_element_type=f32) + b_ref[4:5, :]
    f = f + p_mean
    # Final fc: output padded to 128 lanes (only lane 0 is the real scalar).
    out_ref[...] = jnp.dot(f, wfc_ref[...], preferred_element_type=f32) + b_ref[5:6, :]


def prepare_params(params):
    """One-time (hoisted) weight preprocessing: transpose / stack / pad."""
    (wp, bp), (w1, b1), (w2, b2), (w3, b3), (w4, b4), (w5, b5), (wfc, bfc) = params
    pos_params = jnp.concatenate([wp.T, bp[None, :]], axis=0)              # (4, 128)
    w_hidden = jnp.stack([w1.T, w2.T, w3.T, w4.T, w5.T], axis=0)           # (5, 128, 128)
    b_all = jnp.stack(
        [b1, b2, b3, b4, b5, jnp.pad(bfc, (0, HID - bfc.shape[0]))], axis=0)  # (6, 128)
    wfc_pad = jnp.pad(wfc.T, ((0, 0), (0, HID - wfc.shape[0])))            # (128, 128)
    return pos_params, w_hidden, b_all, wfc_pad


@jax.jit
def shape_decoder_forward(shape_code, pos_emb, prepared):
    """Per-call path: no weight transforms, just the Pallas kernel + slices."""
    pos_params, w_hidden, b_all, wfc_pad = prepared
    vmem = pl.BlockSpec(memory_space=pltpu.MemorySpace.VMEM)
    out_slab, feat_slab = pl.pallas_call(
        _shape_decoder_kernel,
        out_shape=(jax.ShapeDtypeStruct((1, HID), jnp.float32),
                   jax.ShapeDtypeStruct((1, HID), jnp.float32)),
        in_specs=[vmem] * 6,
        out_specs=(vmem, vmem),
    )(shape_code, pos_emb, pos_params, w_hidden, b_all, wfc_pad)
    out = out_slab[0, :1]        # (1,)   == self.fc(feature)
    feature_out = feat_slab[0]   # (128,) == layer3 output
    return out, feature_out


# ----------------------------------------------------------------------------
# Pure-JAX reference (mirrors the PyTorch forward) for correctness checking.
# ----------------------------------------------------------------------------
def shape_decoder_reference(shape_code, pos_emb, params):
    (wp, bp), (w1, b1), (w2, b2), (w3, b3), (w4, b4), (w5, b5), (wfc, bfc) = params
    P = pos_emb @ wp.T + bp
    f = jnp.mean(shape_code + P, axis=0)
    f = f @ w1.T + b1
    f = jnp.mean(f + P, axis=0)
    f = f @ w2.T + b2
    f = jnp.mean(f + P, axis=0)
    feature_out = f @ w3.T + b3
    f = jnp.mean(feature_out + P, axis=0)
    f = f @ w4.T + b4
    f = jnp.mean(f + P, axis=0)
    f = f @ w5.T + b5
    f = jnp.mean(f + P, axis=0)
    out = f @ wfc.T + bfc
    return out, feature_out


def _linear_params(key, in_f, out_f):
    """Deterministic init matching nn.Linear's (out, in) convention."""
    k1, k2 = jax.random.split(key)
    bound = 1.0 / (in_f ** 0.5)
    w = jax.random.uniform(k1, (out_f, in_f), jnp.float32, -bound, bound)
    b = jax.random.uniform(k2, (out_f,), jnp.float32, -bound, bound)
    return w, b


def make_params(seed=42, pos_dim=3):
    keys = jax.random.split(jax.random.PRNGKey(seed), 7)
    return (
        _linear_params(keys[0], pos_dim, HID),  # pos_emb_reshape_layer
        _linear_params(keys[1], HID, HID),      # layer1
        _linear_params(keys[2], HID, HID),      # layer2
        _linear_params(keys[3], HID, HID),      # layer3
        _linear_params(keys[4], HID, HID),      # layer4
        _linear_params(keys[5], HID, HID),      # layer5
        _linear_params(keys[6], HID, 1),        # fc
    )


if __name__ == "__main__":
    N = 8          # number of samples along dim 0 (mean axis)
    POS_DIM = 3

    key = jax.random.PRNGKey(0)
    k_shp, k_pos = jax.random.split(key, 2)
    shape_code = jax.random.normal(k_shp, (N, HID), jnp.float32)
    pos_emb = jax.random.normal(k_pos, (N, POS_DIM), jnp.float32)

    params = make_params()
    prepared = prepare_params(params)          # hoisted: done once, not per call

    out, feature_out = shape_decoder_forward(shape_code, pos_emb, prepared)
    out, feature_out = jax.block_until_ready((out, feature_out))

    out_ref, feat_ref = shape_decoder_reference(shape_code, pos_emb, params)
    assert out.shape == (1,), out.shape
    assert feature_out.shape == (HID,), feature_out.shape
    assert jnp.allclose(out, out_ref, atol=1e-4, rtol=1e-4), (out, out_ref)
    assert jnp.allclose(feature_out, feat_ref, atol=1e-4, rtol=1e-4)

    print("KERNEL_OK")
</pallas_src>

<mosaic_0001>
module attributes {stable_mosaic.version = 11 : i64} {
  func.func @_shape_decoder_kernel(%arg0: memref<8x128xf32, #tpu.memory_space<vmem>>, %arg1: memref<8x3xf32, #tpu.memory_space<vmem>>, %arg2: memref<4x128xf32, #tpu.memory_space<vmem>>, %arg3: memref<5x128x128xf32, #tpu.memory_space<vmem>>, %arg4: memref<6x128xf32, #tpu.memory_space<vmem>>, %arg5: memref<128x128xf32, #tpu.memory_space<vmem>>, %arg6: memref<1x128xf32, #tpu.memory_space<vmem>>, %arg7: memref<1x128xf32, #tpu.memory_space<vmem>>) attributes {dimension_semantics = [], scalar_prefetch = 0 : i64, scratch_operands = 0 : i64, tpu.core_type = #tpu.core_type<tc>} {
    %c0 = arith.constant 0 : index
    %c0_0 = arith.constant 0 : index
    %0 = vector.load %arg1[%c0, %c0_0] : memref<8x3xf32, #tpu.memory_space<vmem>>, vector<8x3xf32>
    %1 = vector.extract_strided_slice %0 {offsets = [0, 0], sizes = [8, 1], strides = [1, 1]} : vector<8x3xf32> to vector<8x1xf32>
    %c0_1 = arith.constant 0 : index
    %c0_2 = arith.constant 0 : index
    %2 = vector.load %arg2[%c0_1, %c0_2] : memref<4x128xf32, #tpu.memory_space<vmem>>, vector<1x128xf32>
    %3 = vector.broadcast %1 : vector<8x1xf32> to vector<8x128xf32>
    %4 = vector.broadcast %2 : vector<1x128xf32> to vector<8x128xf32>
    %5 = arith.mulf %3, %4 : vector<8x128xf32>
    %6 = vector.extract_strided_slice %0 {offsets = [0, 1], sizes = [8, 1], strides = [1, 1]} : vector<8x3xf32> to vector<8x1xf32>
    %c1 = arith.constant 1 : index
    %c0_3 = arith.constant 0 : index
    %7 = vector.load %arg2[%c1, %c0_3] : memref<4x128xf32, #tpu.memory_space<vmem>>, vector<1x128xf32>
    %8 = vector.broadcast %6 : vector<8x1xf32> to vector<8x128xf32>
    %9 = vector.broadcast %7 : vector<1x128xf32> to vector<8x128xf32>
    %10 = arith.mulf %8, %9 : vector<8x128xf32>
    %11 = arith.addf %5, %10 : vector<8x128xf32>
    %12 = vector.extract_strided_slice %0 {offsets = [0, 2], sizes = [8, 1], strides = [1, 1]} : vector<8x3xf32> to vector<8x1xf32>
    %c2 = arith.constant 2 : index
    %c0_4 = arith.constant 0 : index
    %13 = vector.load %arg2[%c2, %c0_4] : memref<4x128xf32, #tpu.memory_space<vmem>>, vector<1x128xf32>
    %14 = vector.broadcast %12 : vector<8x1xf32> to vector<8x128xf32>
    %15 = vector.broadcast %13 : vector<1x128xf32> to vector<8x128xf32>
    %16 = arith.mulf %14, %15 : vector<8x128xf32>
    %17 = arith.addf %11, %16 : vector<8x128xf32>
    %c3 = arith.constant 3 : index
    %c0_5 = arith.constant 0 : index
    %18 = vector.load %arg2[%c3, %c0_5] : memref<4x128xf32, #tpu.memory_space<vmem>>, vector<1x128xf32>
    %19 = vector.broadcast %18 : vector<1x128xf32> to vector<8x128xf32>
    %20 = arith.addf %17, %19 : vector<8x128xf32>
    %cst = arith.constant dense<0.000000e+00> : vector<128xf32>
    %21 = vector.multi_reduction <add>, %20, %cst [0] : vector<8x128xf32> to vector<128xf32>
    %22 = vector.shape_cast %21 : vector<128xf32> to vector<1x128xf32>
    %cst_6 = arith.constant 8.000000e+00 : f32
    %23 = vector.broadcast %cst_6 : f32 to vector<1x128xf32>
    %24 = arith.divf %22, %23 : vector<1x128xf32>
    %c0_7 = arith.constant 0 : index
    %c0_8 = arith.constant 0 : index
    %25 = vector.load %arg0[%c0_7, %c0_8] : memref<8x128xf32, #tpu.memory_space<vmem>>, vector<8x128xf32>
    %cst_9 = arith.constant dense<0.000000e+00> : vector<128xf32>
    %26 = vector.multi_reduction <add>, %25, %cst_9 [0] : vector<8x128xf32> to vector<128xf32>
    %27 = vector.shape_cast %26 : vector<128xf32> to vector<1x128xf32>
    %cst_10 = arith.constant 8.000000e+00 : f32
    %28 = vector.broadcast %cst_10 : f32 to vector<1x128xf32>
    %29 = arith.divf %27, %28 : vector<1x128xf32>
    %30 = arith.addf %29, %24 : vector<1x128xf32>
    %c0_11 = arith.constant 0 : index
    %c0_12 = arith.constant 0 : index
    %c0_13 = arith.constant 0 : index
    %31 = vector.load %arg3[%c0_11, %c0_12, %c0_13] : memref<5x128x128xf32, #tpu.memory_space<vmem>>, vector<1x128x128xf32>
    %32 = vector.shape_cast %31 : vector<1x128x128xf32> to vector<128x128xf32>
    %cst_14 = arith.constant dense<0.000000e+00> : vector<1x128xf32>
    %33 = tpu.matmul %30, %32, %cst_14 {dimension_numbers = #tpu.dot_dimension_numbers<[1], [0], [0], [1], [0, 0, 1, 1], [], []>} : vector<1x128xf32>, vector<128x128xf32>, vector<1x128xf32> -> vector<1x128xf32>
    %c0_15 = arith.constant 0 : index
    %c0_16 = arith.constant 0 : index
    %34 = vector.load %arg4[%c0_15, %c0_16] : memref<6x128xf32, #tpu.memory_space<vmem>>, vector<1x128xf32>
    %35 = arith.addf %33, %34 : vector<1x128xf32>
    %36 = arith.addf %35, %24 : vector<1x128xf32>
    %c1_17 = arith.constant 1 : index
    %c0_18 = arith.constant 0 : index
    %c0_19 = arith.constant 0 : index
    %37 = vector.load %arg3[%c1_17, %c0_18, %c0_19] : memref<5x128x128xf32, #tpu.memory_space<vmem>>, vector<1x128x128xf32>
    %38 = vector.shape_cast %37 : vector<1x128x128xf32> to vector<128x128xf32>
    %cst_20 = arith.constant dense<0.000000e+00> : vector<1x128xf32>
    %39 = tpu.matmul %36, %38, %cst_20 {dimension_numbers = #tpu.dot_dimension_numbers<[1], [0], [0], [1], [0, 0, 1, 1], [], []>} : vector<1x128xf32>, vector<128x128xf32>, vector<1x128xf32> -> vector<1x128xf32>
    %c1_21 = arith.constant 1 : index
    %c0_22 = arith.constant 0 : index
    %40 = vector.load %arg4[%c1_21, %c0_22] : memref<6x128xf32, #tpu.memory_space<vmem>>, vector<1x128xf32>
    %41 = arith.addf %39, %40 : vector<1x128xf32>
    %42 = arith.addf %41, %24 : vector<1x128xf32>
    %c2_23 = arith.constant 2 : index
    %c0_24 = arith.constant 0 : index
    %c0_25 = arith.constant 0 : index
    %43 = vector.load %arg3[%c2_23, %c0_24, %c0_25] : memref<5x128x128xf32, #tpu.memory_space<vmem>>, vector<1x128x128xf32>
    %44 = vector.shape_cast %43 : vector<1x128x128xf32> to vector<128x128xf32>
    %cst_26 = arith.constant dense<0.000000e+00> : vector<1x128xf32>
    %45 = tpu.matmul %42, %44, %cst_26 {dimension_numbers = #tpu.dot_dimension_numbers<[1], [0], [0], [1], [0, 0, 1, 1], [], []>} : vector<1x128xf32>, vector<128x128xf32>, vector<1x128xf32> -> vector<1x128xf32>
    %c2_27 = arith.constant 2 : index
    %c0_28 = arith.constant 0 : index
    %46 = vector.load %arg4[%c2_27, %c0_28] : memref<6x128xf32, #tpu.memory_space<vmem>>, vector<1x128xf32>
    %47 = arith.addf %45, %46 : vector<1x128xf32>
    %c0_29 = arith.constant 0 : index
    %c0_30 = arith.constant 0 : index
    %48 = vector.load %arg7[%c0_29, %c0_30] : memref<1x128xf32, #tpu.memory_space<vmem>>, vector<1x128xf32>
    tpu.vector_store %arg7[%c0_29, %c0_30], %47 {strides = array<i32>} : memref<1x128xf32, #tpu.memory_space<vmem>>, vector<1x128xf32>,
    %49 = arith.addf %47, %24 : vector<1x128xf32>
    %c3_31 = arith.constant 3 : index
    %c0_32 = arith.constant 0 : index
    %c0_33 = arith.constant 0 : index
    %50 = vector.load %arg3[%c3_31, %c0_32, %c0_33] : memref<5x128x128xf32, #tpu.memory_space<vmem>>, vector<1x128x128xf32>
    %51 = vector.shape_cast %50 : vector<1x128x128xf32> to vector<128x128xf32>
    %cst_34 = arith.constant dense<0.000000e+00> : vector<1x128xf32>
    %52 = tpu.matmul %49, %51, %cst_34 {dimension_numbers = #tpu.dot_dimension_numbers<[1], [0], [0], [1], [0, 0, 1, 1], [], []>} : vector<1x128xf32>, vector<128x128xf32>, vector<1x128xf32> -> vector<1x128xf32>
    %c3_35 = arith.constant 3 : index
    %c0_36 = arith.constant 0 : index
    %53 = vector.load %arg4[%c3_35, %c0_36] : memref<6x128xf32, #tpu.memory_space<vmem>>, vector<1x128xf32>
    %54 = arith.addf %52, %53 : vector<1x128xf32>
    %55 = arith.addf %54, %24 : vector<1x128xf32>
    %c4 = arith.constant 4 : index
    %c0_37 = arith.constant 0 : index
    %c0_38 = arith.constant 0 : index
    %56 = vector.load %arg3[%c4, %c0_37, %c0_38] : memref<5x128x128xf32, #tpu.memory_space<vmem>>, vector<1x128x128xf32>
    %57 = vector.shape_cast %56 : vector<1x128x128xf32> to vector<128x128xf32>
    %cst_39 = arith.constant dense<0.000000e+00> : vector<1x128xf32>
    %58 = tpu.matmul %55, %57, %cst_39 {dimension_numbers = #tpu.dot_dimension_numbers<[1], [0], [0], [1], [0, 0, 1, 1], [], []>} : vector<1x128xf32>, vector<128x128xf32>, vector<1x128xf32> -> vector<1x128xf32>
    %c4_40 = arith.constant 4 : index
    %c0_41 = arith.constant 0 : index
    %59 = vector.load %arg4[%c4_40, %c0_41] : memref<6x128xf32, #tpu.memory_space<vmem>>, vector<1x128xf32>
    %60 = arith.addf %58, %59 : vector<1x128xf32>
    %61 = arith.addf %60, %24 : vector<1x128xf32>
    %c0_42 = arith.constant 0 : index
    %c0_43 = arith.constant 0 : index
    %62 = vector.load %arg5[%c0_42, %c0_43] : memref<128x128xf32, #tpu.memory_space<vmem>>, vector<128x128xf32>
    %cst_44 = arith.constant dense<0.000000e+00> : vector<1x128xf32>
    %63 = tpu.matmul %61, %62, %cst_44 {dimension_numbers = #tpu.dot_dimension_numbers<[1], [0], [0], [1], [0, 0, 1, 1], [], []>} : vector<1x128xf32>, vector<128x128xf32>, vector<1x128xf32> -> vector<1x128xf32>
    %c5 = arith.constant 5 : index
    %c0_45 = arith.constant 0 : index
    %64 = vector.load %arg4[%c5, %c0_45] : memref<6x128xf32, #tpu.memory_space<vmem>>, vector<1x128xf32>
    %65 = arith.addf %63, %64 : vector<1x128xf32>
    %c0_46 = arith.constant 0 : index
    %c0_47 = arith.constant 0 : index
    %66 = vector.load %arg6[%c0_46, %c0_47] : memref<1x128xf32, #tpu.memory_space<vmem>>, vector<1x128xf32>
    tpu.vector_store %arg6[%c0_46, %c0_47], %65 {strides = array<i32>} : memref<1x128xf32, #tpu.memory_space<vmem>>, vector<1x128xf32>,
    return
  }
}

</mosaic_0001>

<llo_original>
// kernel: shape_decoder_forward.1
$region0: #{shape_decoder_forward.1}
  #allocation0 [shape = 'u32[]', space=smem, size = 0x4, offset = 0x4, fixed_abs, tag = 'smem constant byte address 0x4 - core index']
  #allocation1 [shape = 'u32[144,128]{1,0:T(1,128)}', space=vmem, size = 0x12000, scoped, tag = 'internal scratch']
  %s0 = inlined_call_operand.vmem [shape: f32[8,128], index: 0, kind: input, shape index: {}]
  %s1 = inlined_call_operand.vmem [shape: f32[8,3], index: 1, kind: input, shape index: {}]
  %s2 = inlined_call_operand.hbm [shape: f32[4,128], index: 2, kind: input, shape index: {}]
  %s3 = inlined_call_operand.hbm [shape: f32[5,128,128], index: 3, kind: input, shape index: {}]
  %s4 = inlined_call_operand.vmem [shape: f32[6,128], index: 4, kind: input, shape index: {}]
  %s5 = inlined_call_operand.hbm [shape: f32[128,128], index: 5, kind: input, shape index: {}]
  %s6 = inlined_call_operand.hbm [shape: f32[1,128], index: 6, kind: output, shape index: {0}]
  %s7 = inlined_call_operand.hbm [shape: f32[1,128], index: 7, kind: output, shape index: {1}]
  %8 = xla_tuple %s6, %s7
  %s9 = sld [smem:[#allocation0]]
  $region54: #{shape_decoder_forward.1} parent=0
    _
  %s11 = ssub.s32 1, %s9
  %s12 = scalar_select 0, %s11, %s9
  $region1: #{shape_decoder_forward.1} parent=0
    #allocation2 [shape = 'u8[2048]{0}', space=vmem, size = 0x800, scoped, tag = 'input window, operand 2, single buffered']
    #allocation3 [shape = 's32[1]{0}', space=sflag, size = 0x4, scoped, tag = 'scoped memory for shape_decoder_forward.1']
    #allocation4 [shape = 's32[1]{0}', space=sflag, size = 0x4, scoped, tag = 'scoped memory for shape_decoder_forward.1']
    #allocation5 [shape = 'u8[327680]{0}', space=vmem, size = 0x50000, scoped, tag = 'input window, operand 3, single buffered']
    #allocation6 [shape = 's32[1]{0}', space=sflag, size = 0x4, scoped, tag = 'scoped memory for shape_decoder_forward.1']
    #allocation7 [shape = 'u8[65536]{0}', space=vmem, size = 0x10000, scoped, tag = 'input window, operand 5, single buffered']
    #allocation8 [shape = 'u8[512]{0}', space=vmem, size = 0x400, scoped, tag = 'output window, operand 0, single buffered']
    #allocation9 [shape = 'u8[512]{0}', space=vmem, size = 0x400, scoped, tag = 'output window, operand 1, single buffered']
    #allocation10 [shape = 's32[1]{0}', space=sflag, size = 0x4, scoped, tag = 'scoped memory for shape_decoder_forward.1']
    %13 = vsyncpa [#allocation3], 0
    %14 = vsyncpa [#allocation6], 0
    %15 = vsyncpa [#allocation4], 0
    %16 = vsyncpa [#allocation10], 0
    // Predicated region
    $region2: #{shape_decoder_forward.1} parent=1 // pred_check
      _
    $region3: #{shape_decoder_forward.1} parent=1 // pred_check_branch
      %18 = sbr.rel (0) target = $region5
    $region4: #{shape_decoder_forward.1} parent=1 // pred_region
      _
    $region5: #{shape_decoder_forward.1} parent=1 // pred_fallthru
      _
    // Predicated region
    $region6: #{shape_decoder_forward.1} parent=1 // pred_check
      _
    $region7: #{shape_decoder_forward.1} parent=1 // pred_check_branch
      %20 = sbr.rel (0) target = $region9
    $region8: #{shape_decoder_forward.1} parent=1 // pred_region
      _
    $region9: #{shape_decoder_forward.1} parent=1 // pred_fallthru
      _
    // Predicated region
    $region10: #{shape_decoder_forward.1} parent=1 // pred_check
      _
    $region11: #{shape_decoder_forward.1} parent=1 // pred_check_branch
      %22 = sbr.rel (0) target = $region13
    $region12: #{shape_decoder_forward.1} parent=1 // pred_region
      %s24 = ssub.s32 64, 64
      %25 = vsyncadd [#allocation3], %s24
      %s27 = sshll.u32 [#allocation2], 4
      %s28 = int_to_ptr.vmem [resolvable:$true] %s27
      %30 = dma.hbm_to_vmem [thread:$0]  %s2, 64, %s28, [#allocation3]
    $region13: #{shape_decoder_forward.1} parent=1 // pred_fallthru
      _
    // Predicated region
    $region14: #{shape_decoder_forward.1} parent=1 // pred_check
      _
    $region15: #{shape_decoder_forward.1} parent=1 // pred_check_branch
      %32 = sbr.rel (0) target = $region17
    $region16: #{shape_decoder_forward.1} parent=1 // pred_region
      %s34 = ssub.s32 10240, 10240
      %35 = vsyncadd [#allocation6], %s34
      %s36 = sshll.u32 [#allocation5], 4
      %s37 = int_to_ptr.vmem [resolvable:$true] %s36
      %42 = dma.hbm_to_vmem [thread:$0]  %s3, 10240, %s37, [#allocation6], 128, 128, 8
    $region17: #{shape_decoder_forward.1} parent=1 // pred_fallthru
      _
    // Predicated region
    $region18: #{shape_decoder_forward.1} parent=1 // pred_check
      _
    $region19: #{shape_decoder_forward.1} parent=1 // pred_check_branch
      %44 = sbr.rel (0) target = $region21
    $region20: #{shape_decoder_forward.1} parent=1 // pred_region
      _
    $region21: #{shape_decoder_forward.1} parent=1 // pred_fallthru
      _
    // Predicated region
    $region22: #{shape_decoder_forward.1} parent=1 // pred_check
      _
    $region23: #{shape_decoder_forward.1} parent=1 // pred_check_branch
      %46 = sbr.rel (0) target = $region25
    $region24: #{shape_decoder_forward.1} parent=1 // pred_region
      %s48 = ssub.s32 2048, 2048
      %49 = vsyncadd [#allocation6], %s48
      %s50 = sshll.u32 [#allocation7], 4
      %s51 = int_to_ptr.vmem [resolvable:$true] %s50
      %56 = dma.hbm_to_vmem [thread:$0]  %s5, 2048, %s51, [#allocation6], 128, 128, 8
    $region25: #{shape_decoder_forward.1} parent=1 // pred_fallthru
      _
    // Predicated region
    $region26: #{shape_decoder_forward.1} parent=1 // pred_check
      _
    $region27: #{shape_decoder_forward.1} parent=1 // pred_check_branch
      %58 = sbr.rel (0) target = $region29
    $region28: #{shape_decoder_forward.1} parent=1 // pred_region
      %59 = dma.done [#allocation3], 64
    $region29: #{shape_decoder_forward.1} parent=1 // pred_fallthru
      _
    // Predicated region
    $region30: #{shape_decoder_forward.1} parent=1 // pred_check
      _
    $region31: #{shape_decoder_forward.1} parent=1 // pred_check_branch
      %61 = sbr.rel (0) target = $region33
    $region32: #{shape_decoder_forward.1} parent=1 // pred_region
      %62 = dma.done [#allocation6], 10240
    $region33: #{shape_decoder_forward.1} parent=1 // pred_fallthru
      _
    // Predicated region
    $region34: #{shape_decoder_forward.1} parent=1 // pred_check
      _
    $region35: #{shape_decoder_forward.1} parent=1 // pred_check_branch
      %64 = sbr.rel (0) target = $region37
    $region36: #{shape_decoder_forward.1} parent=1 // pred_region
      %65 = dma.done [#allocation6], 2048
    $region37: #{shape_decoder_forward.1} parent=1 // pred_fallthru
      _
    %v66 = vld [vmem:[%s1] sm:$0xff]
    %v67 = vld [vmem:[#allocation2] sm:$0x1]
    %69 = vset.pattern.permute.xlu0 0
    %70 = vperm.xlu0 %69, %v66
    %v71 = vpop.permute.xlu0 %70
    %v73 = vlaneseq
    %v74 = vshrl.u32 %v73, 7
    %v75 = vsub.s32 0, %v74
    %v76 = vrot.slane %v67, %v75
    %v77 = vmul.f32 %v71, %v76
    %v78 = vld [vmem:[#allocation2 + $0x1] sm:$0x1]
    %79 = vset.pattern.permute.xlu0 1
    %80 = vperm.xlu0 %79, %v66
    %v81 = vpop.permute.xlu0 %80
    %v83 = vlaneseq
    %v84 = vshrl.u32 %v83, 7
    %v85 = vsub.s32 0, %v84
    %v86 = vrot.slane %v78, %v85
    %v87 = vmul.f32 %v81, %v86
    %v88 = vadd.f32 %v77, %v87
    %v89 = vld [vmem:[#allocation2 + $0x2] sm:$0x1]
    %90 = vset.pattern.permute.xlu0 2
    %91 = vperm.xlu0 %90, %v66
    %v92 = vpop.permute.xlu0 %91
    %v94 = vlaneseq
    %v95 = vshrl.u32 %v94, 7
    %v96 = vsub.s32 0, %v95
    %v97 = vrot.slane %v89, %v96
    %v98 = vmul.f32 %v92, %v97
    %v99 = vadd.f32 %v88, %v98
    %v100 = vld [vmem:[#allocation2 + $0x3] sm:$0x1]
    %v101 = vlaneseq
    %v102 = vshrl.u32 %v101, 7
    %v103 = vsub.s32 0, %v102
    %v104 = vrot.slane %v100, %v103
    %v105 = vadd.f32 %v99, %v104
    %v106 = vrot.slane %v105, 4
    %v107 = vadd.f32 %v105, %v106
    %v108 = vrot.slane %v107, 2
    %v109 = vadd.f32 %v107, %v108
    %v110 = vrot.slane %v109, 1
    %v111 = vadd.f32 %v109, %v110
    %v112 = vrcp.pop 8.0
    %v113 = vmul.f32 %v111, %v112
    %v114 = vld [vmem:[%s0] sm:$0xff]
    %v115 = vrot.slane %v114, 4
    %v116 = vadd.f32 %v114, %v115
    %v117 = vrot.slane %v116, 2
    %v118 = vadd.f32 %v116, %v117
    %v119 = vrot.slane %v118, 1
    %v120 = vadd.f32 %v118, %v119
    %v121 = vmul.f32 %v120, %v112
    %v122 = vadd.f32 %v121, %v113
    %v123 = vld [vmem:[#allocation5] sm:$0xff]
    %v124 = vld [vmem:[#allocation5 + $0x8] sm:$0xff]
    %v125 = vld [vmem:[#allocation5 + $0x10] sm:$0xff]
    %v126 = vld [vmem:[#allocation5 + $0x18] sm:$0xff]
    %v127 = vld [vmem:[#allocation5 + $0x20] sm:$0xff]
    %v128 = vld [vmem:[#allocation5 + $0x28] sm:$0xff]
    %v129 = vld [vmem:[#allocation5 + $0x30] sm:$0xff]
    %v130 = vld [vmem:[#allocation5 + $0x38] sm:$0xff]
    %v131 = vld [vmem:[#allocation5 + $0x40] sm:$0xff]
    %v132 = vld [vmem:[#allocation5 + $0x48] sm:$0xff]
    %v133 = vld [vmem:[#allocation5 + $0x50] sm:$0xff]
    %v134 = vld [vmem:[#allocation5 + $0x58] sm:$0xff]
    %v135 = vld [vmem:[#allocation5 + $0x60] sm:$0xff]
    %v136 = vld [vmem:[#allocation5 + $0x68] sm:$0xff]
    %v137 = vld [vmem:[#allocation5 + $0x70] sm:$0xff]
    %v138 = vld [vmem:[#allocation5 + $0x78] sm:$0xff]
    %v139 = vld [vmem:[%s4] sm:$0x1]
    %140 = vmatprep.subr.mxu0 0.0
    %141 = vmatpush1.msra.mxu0 %v138
    %142 = vmatprep.subr.mxu0 0.0
    %143 = vmatpush1.msra.mxu0 %v137
    %144 = vmatprep.subr.mxu0 0.0
    %145 = vmatpush1.msra.mxu0 %v136
    %146 = vmatprep.subr.mxu0 0.0
    %147 = vmatpush1.msra.mxu0 %v135
    %148 = vmatprep.subr.mxu0 0.0
    %149 = vmatpush1.msra.mxu0 %v134
    %150 = vmatprep.subr.mxu0 0.0
    %151 = vmatpush1.msra.mxu0 %v133
    %152 = vmatprep.subr.mxu0 0.0
    %153 = vmatpush1.msra.mxu0 %v132
    %154 = vmatprep.subr.mxu0 0.0
    %155 = vmatpush1.msra.mxu0 %v131
    %156 = vmatprep.subr.mxu0 0.0
    %157 = vmatpush1.msra.mxu0 %v130
    %158 = vmatprep.subr.mxu0 0.0
    %159 = vmatpush1.msra.mxu0 %v129
    %160 = vmatprep.subr.mxu0 0.0
    %161 = vmatpush1.msra.mxu0 %v128
    %162 = vmatprep.subr.mxu0 0.0
    %163 = vmatpush1.msra.mxu0 %v127
    %164 = vmatprep.subr.mxu0 0.0
    %165 = vmatpush1.msra.mxu0 %v126
    %166 = vmatprep.subr.mxu0 0.0
    %167 = vmatpush1.msra.mxu0 %v125
    %168 = vmatprep.subr.mxu0 0.0
    %169 = vmatpush1.msra.mxu0 %v124
    %170 = vmatprep.subr.mxu0 0.0
    %171 = vmatpush1.msra.mxu0 %v123
    %172 = vmatprep.subr.mxu0 0.0
    %173 = vmatpush2.msra.mxu0 0.0
    %174 = vmatprep.subr.mxu0 0.0
    %175 = vmatpush2.msra.mxu0 0.0
    %176 = vmatprep.subr.mxu0 0.0
    %177 = vmatpush2.msra.mxu0 0.0
    %178 = vmatprep.subr.mxu0 0.0
    %179 = vmatpush2.msra.mxu0 0.0
    %180 = vmatprep.subr.mxu0 0.0
    %181 = vmatpush2.msra.mxu0 0.0
    %182 = vmatprep.subr.mxu0 0.0
    %183 = vmatpush2.msra.mxu0 0.0
    %184 = vmatprep.subr.mxu0 0.0
    %185 = vmatpush2.msra.mxu0 0.0
    %186 = vmatprep.subr.mxu0 0.0
    %187 = vmatpush2.msra.mxu0 0.0
    %188 = vmatprep.subr.mxu0 0.0
    %189 = vmatpush2.msra.mxu0 0.0
    %190 = vmatprep.subr.mxu0 0.0
    %191 = vmatpush2.msra.mxu0 0.0
    %192 = vmatprep.subr.mxu0 0.0
    %193 = vmatpush2.msra.mxu0 0.0
    %194 = vmatprep.subr.mxu0 0.0
    %195 = vmatpush2.msra.mxu0 0.0
    %196 = vmatprep.subr.mxu0 0.0
    %197 = vmatpush2.msra.mxu0 0.0
    %198 = vmatprep.subr.mxu0 0.0
    %199 = vmatpush2.msra.mxu0 0.0
    %200 = vmatprep.subr.mxu0 0.0
    %201 = vmatpush2.msra.mxu0 0.0
    %202 = vmatprep.subr.mxu0 0.0
    %203 = vmatpush2.msra.mxu0 0.0
    %204 = vmatprep.mubr.f32.mxu0 0.0
    %205 = vmatmul.mubr.f32.gmra.mxu0 %v122
    %v206 = vpop.f32.mrf.mxu0
    %v207 = vadd.f32 %v139, %v206
    %v208 = vpop.f32.mrf.mxu0
    %209 = vdwg.mxu0
    %v210 = vadd.f32 %v207, %v113
    %s211 = scalar_lea.vmem [#allocation5], 128
    %v212 = vld [vmem:[%s211] sm:$0xff]
    %v213 = vld [vmem:[%s211 + $0x8] sm:$0xff]
    %v214 = vld [vmem:[%s211 + $0x10] sm:$0xff]
    %v215 = vld [vmem:[%s211 + $0x18] sm:$0xff]
    %v216 = vld [vmem:[%s211 + $0x20] sm:$0xff]
    %v217 = vld [vmem:[%s211 + $0x28] sm:$0xff]
    %v218 = vld [vmem:[%s211 + $0x30] sm:$0xff]
    %v219 = vld [vmem:[%s211 + $0x38] sm:$0xff]
    %v220 = vld [vmem:[%s211 + $0x40] sm:$0xff]
    %v221 = vld [vmem:[%s211 + $0x48] sm:$0xff]
    %v222 = vld [vmem:[%s211 + $0x50] sm:$0xff]
    %v223 = vld [vmem:[%s211 + $0x58] sm:$0xff]
    %v224 = vld [vmem:[%s211 + $0x60] sm:$0xff]
    %v225 = vld [vmem:[%s211 + $0x68] sm:$0xff]
    %v226 = vld [vmem:[%s211 + $0x70] sm:$0xff]
    %v227 = vld [vmem:[%s211 + $0x78] sm:$0xff]
    %v228 = vld [vmem:[%s4 + $0x1] sm:$0x1]
    %229 = vmatprep.subr.mxu0 0.0
    %230 = vmatpush1.msra.mxu0 %v227
    %231 = vmatprep.subr.mxu0 0.0
    %232 = vmatpush1.msra.mxu0 %v226
    %233 = vmatprep.subr.mxu0 0.0
    %234 = vmatpush1.msra.mxu0 %v225
    %235 = vmatprep.subr.mxu0 0.0
    %236 = vmatpush1.msra.mxu0 %v224
    %237 = vmatprep.subr.mxu0 0.0
    %238 = vmatpush1.msra.mxu0 %v223
    %239 = vmatprep.subr.mxu0 0.0
    %240 = vmatpush1.msra.mxu0 %v222
    %241 = vmatprep.subr.mxu0 0.0
    %242 = vmatpush1.msra.mxu0 %v221
    %243 = vmatprep.subr.mxu0 0.0
    %244 = vmatpush1.msra.mxu0 %v220
    %245 = vmatprep.subr.mxu0 0.0
    %246 = vmatpush1.msra.mxu0 %v219
    %247 = vmatprep.subr.mxu0 0.0
    %248 = vmatpush1.msra.mxu0 %v218
    %249 = vmatprep.subr.mxu0 0.0
    %250 = vmatpush1.msra.mxu0 %v217
    %251 = vmatprep.subr.mxu0 0.0
    %252 = vmatpush1.msra.mxu0 %v216
    %253 = vmatprep.subr.mxu0 0.0
    %254 = vmatpush1.msra.mxu0 %v215
    %255 = vmatprep.subr.mxu0 0.0
    %256 = vmatpush1.msra.mxu0 %v214
    %257 = vmatprep.subr.mxu0 0.0
    %258 = vmatpush1.msra.mxu0 %v213
    %259 = vmatprep.subr.mxu0 0.0
    %260 = vmatpush1.msra.mxu0 %v212
    %261 = vmatprep.subr.mxu0 0.0
    %262 = vmatpush2.msra.mxu0 0.0
    %263 = vmatprep.subr.mxu0 0.0
    %264 = vmatpush2.msra.mxu0 0.0
    %265 = vmatprep.subr.mxu0 0.0
    %266 = vmatpush2.msra.mxu0 0.0
    %267 = vmatprep.subr.mxu0 0.0
    %268 = vmatpush2.msra.mxu0 0.0
    %269 = vmatprep.subr.mxu0 0.0
    %270 = vmatpush2.msra.mxu0 0.0
    %271 = vmatprep.subr.mxu0 0.0
    %272 = vmatpush2.msra.mxu0 0.0
    %273 = vmatprep.subr.mxu0 0.0
    %274 = vmatpush2.msra.mxu0 0.0
    %275 = vmatprep.subr.mxu0 0.0
    %276 = vmatpush2.msra.mxu0 0.0
    %277 = vmatprep.subr.mxu0 0.0
    %278 = vmatpush2.msra.mxu0 0.0
    %279 = vmatprep.subr.mxu0 0.0
    %280 = vmatpush2.msra.mxu0 0.0
    %281 = vmatprep.subr.mxu0 0.0
    %282 = vmatpush2.msra.mxu0 0.0
    %283 = vmatprep.subr.mxu0 0.0
    %284 = vmatpush2.msra.mxu0 0.0
    %285 = vmatprep.subr.mxu0 0.0
    %286 = vmatpush2.msra.mxu0 0.0
    %287 = vmatprep.subr.mxu0 0.0
    %288 = vmatpush2.msra.mxu0 0.0
    %289 = vmatprep.subr.mxu0 0.0
    %290 = vmatpush2.msra.mxu0 0.0
    %291 = vmatprep.subr.mxu0 0.0
    %292 = vmatpush2.msra.mxu0 0.0
    %293 = vmatprep.mubr.f32.mxu0 0.0
    %294 = vmatmul.mubr.f32.gmra.mxu0 %v210
    %v295 = vpop.f32.mrf.mxu0
    %v296 = vadd.f32 %v228, %v295
    %v297 = vpop.f32.mrf.mxu0
    %298 = vdwg.mxu0
    %v299 = vadd.f32 %v296, %v113
    %s300 = scalar_lea.vmem [#allocation5], 256
    %v301 = vld [vmem:[%s300] sm:$0xff]
    %v302 = vld [vmem:[%s300 + $0x8] sm:$0xff]
    %v303 = vld [vmem:[%s300 + $0x10] sm:$0xff]
    %v304 = vld [vmem:[%s300 + $0x18] sm:$0xff]
    %v305 = vld [vmem:[%s300 + $0x20] sm:$0xff]
    %v306 = vld [vmem:[%s300 + $0x28] sm:$0xff]
    %v307 = vld [vmem:[%s300 + $0x30] sm:$0xff]
    %v308 = vld [vmem:[%s300 + $0x38] sm:$0xff]
    %v309 = vld [vmem:[%s300 + $0x40] sm:$0xff]
    %v310 = vld [vmem:[%s300 + $0x48] sm:$0xff]
    %v311 = vld [vmem:[%s300 + $0x50] sm:$0xff]
    %v312 = vld [vmem:[%s300 + $0x58] sm:$0xff]
    %v313 = vld [vmem:[%s300 + $0x60] sm:$0xff]
    %v314 = vld [vmem:[%s300 + $0x68] sm:$0xff]
    %v315 = vld [vmem:[%s300 + $0x70] sm:$0xff]
    %v316 = vld [vmem:[%s300 + $0x78] sm:$0xff]
    %v317 = vld [vmem:[%s4 + $0x2] sm:$0x1]
    %318 = vmatprep.subr.mxu0 0.0
    %319 = vmatpush1.msra.mxu0 %v316
    %320 = vmatprep.subr.mxu0 0.0
    %321 = vmatpush1.msra.mxu0 %v315
    %322 = vmatprep.subr.mxu0 0.0
    %323 = vmatpush1.msra.mxu0 %v314
    %324 = vmatprep.subr.mxu0 0.0
    %325 = vmatpush1.msra.mxu0 %v313
    %326 = vmatprep.subr.mxu0 0.0
    %327 = vmatpush1.msra.mxu0 %v312
    %328 = vmatprep.subr.mxu0 0.0
    %329 = vmatpush1.msra.mxu0 %v311
    %330 = vmatprep.subr.mxu0 0.0
    %331 = vmatpush1.msra.mxu0 %v310
    %332 = vmatprep.subr.mxu0 0.0
    %333 = vmatpush1.msra.mxu0 %v309
    %334 = vmatprep.subr.mxu0 0.0
    %335 = vmatpush1.msra.mxu0 %v308
    %336 = vmatprep.subr.mxu0 0.0
    %337 = vmatpush1.msra.mxu0 %v307
    %338 = vmatprep.subr.mxu0 0.0
    %339 = vmatpush1.msra.mxu0 %v306
    %340 = vmatprep.subr.mxu0 0.0
    %341 = vmatpush1.msra.mxu0 %v305
    %342 = vmatprep.subr.mxu0 0.0
    %343 = vmatpush1.msra.mxu0 %v304
    %344 = vmatprep.subr.mxu0 0.0
    %345 = vmatpush1.msra.mxu0 %v303
    %346 = vmatprep.subr.mxu0 0.0
    %347 = vmatpush1.msra.mxu0 %v302
    %348 = vmatprep.subr.mxu0 0.0
    %349 = vmatpush1.msra.mxu0 %v301
    %350 = vmatprep.subr.mxu0 0.0
    %351 = vmatpush2.msra.mxu0 0.0
    %352 = vmatprep.subr.mxu0 0.0
    %353 = vmatpush2.msra.mxu0 0.0
    %354 = vmatprep.subr.mxu0 0.0
    %355 = vmatpush2.msra.mxu0 0.0
    %356 = vmatprep.subr.mxu0 0.0
    %357 = vmatpush2.msra.mxu0 0.0
    %358 = vmatprep.subr.mxu0 0.0
    %359 = vmatpush2.msra.mxu0 0.0
    %360 = vmatprep.subr.mxu0 0.0
    %361 = vmatpush2.msra.mxu0 0.0
    %362 = vmatprep.subr.mxu0 0.0
    %363 = vmatpush2.msra.mxu0 0.0
    %364 = vmatprep.subr.mxu0 0.0
    %365 = vmatpush2.msra.mxu0 0.0
    %366 = vmatprep.subr.mxu0 0.0
    %367 = vmatpush2.msra.mxu0 0.0
    %368 = vmatprep.subr.mxu0 0.0
    %369 = vmatpush2.msra.mxu0 0.0
    %370 = vmatprep.subr.mxu0 0.0
    %371 = vmatpush2.msra.mxu0 0.0
    %372 = vmatprep.subr.mxu0 0.0
    %373 = vmatpush2.msra.mxu0 0.0
    %374 = vmatprep.subr.mxu0 0.0
    %375 = vmatpush2.msra.mxu0 0.0
    %376 = vmatprep.subr.mxu0 0.0
    %377 = vmatpush2.msra.mxu0 0.0
    %378 = vmatprep.subr.mxu0 0.0
    %379 = vmatpush2.msra.mxu0 0.0
    %380 = vmatprep.subr.mxu0 0.0
    %381 = vmatpush2.msra.mxu0 0.0
    %382 = vmatprep.mubr.f32.mxu0 0.0
    %383 = vmatmul.mubr.f32.gmra.mxu0 %v299
    %v384 = vpop.f32.mrf.mxu0
    %v385 = vadd.f32 %v317, %v384
    %v386 = vpop.f32.mrf.mxu0
    %387 = vdwg.mxu0
    %388 = vst [vmem:[#allocation9] sm:$0x1] %v385
    %v389 = vadd.f32 %v385, %v113
    %s390 = scalar_lea.vmem [#allocation5], 384
    %v391 = vld [vmem:[%s390] sm:$0xff]
    %v392 = vld [vmem:[%s390 + $0x8] sm:$0xff]
    %v393 = vld [vmem:[%s390 + $0x10] sm:$0xff]
    %v394 = vld [vmem:[%s390 + $0x18] sm:$0xff]
    %v395 = vld [vmem:[%s390 + $0x20] sm:$0xff]
    %v396 = vld [vmem:[%s390 + $0x28] sm:$0xff]
    %v397 = vld [vmem:[%s390 + $0x30] sm:$0xff]
    %v398 = vld [vmem:[%s390 + $0x38] sm:$0xff]
    %v399 = vld [vmem:[%s390 + $0x40] sm:$0xff]
    %v400 = vld [vmem:[%s390 + $0x48] sm:$0xff]
    %v401 = vld [vmem:[%s390 + $0x50] sm:$0xff]
    %v402 = vld [vmem:[%s390 + $0x58] sm:$0xff]
    %v403 = vld [vmem:[%s390 + $0x60] sm:$0xff]
    %v404 = vld [vmem:[%s390 + $0x68] sm:$0xff]
    %v405 = vld [vmem:[%s390 + $0x70] sm:$0xff]
    %v406 = vld [vmem:[%s390 + $0x78] sm:$0xff]
    %v407 = vld [vmem:[%s4 + $0x3] sm:$0x1]
    %408 = vmatprep.subr.mxu0 0.0
    %409 = vmatpush1.msra.mxu0 %v406
    %410 = vmatprep.subr.mxu0 0.0
    %411 = vmatpush1.msra.mxu0 %v405
    %412 = vmatprep.subr.mxu0 0.0
    %413 = vmatpush1.msra.mxu0 %v404
    %414 = vmatprep.subr.mxu0 0.0
    %415 = vmatpush1.msra.mxu0 %v403
    %416 = vmatprep.subr.mxu0 0.0
    %417 = vmatpush1.msra.mxu0 %v402
    %418 = vmatprep.subr.mxu0 0.0
    %419 = vmatpush1.msra.mxu0 %v401
    %420 = vmatprep.subr.mxu0 0.0
    %421 = vmatpush1.msra.mxu0 %v400
    %422 = vmatprep.subr.mxu0 0.0
    %423 = vmatpush1.msra.mxu0 %v399
    %424 = vmatprep.subr.mxu0 0.0
    %425 = vmatpush1.msra.mxu0 %v398
    %426 = vmatprep.subr.mxu0 0.0
    %427 = vmatpush1.msra.mxu0 %v397
    %428 = vmatprep.subr.mxu0 0.0
    %429 = vmatpush1.msra.mxu0 %v396
    %430 = vmatprep.subr.mxu0 0.0
    %431 = vmatpush1.msra.mxu0 %v395
    %432 = vmatprep.subr.mxu0 0.0
    %433 = vmatpush1.msra.mxu0 %v394
    %434 = vmatprep.subr.mxu0 0.0
    %435 = vmatpush1.msra.mxu0 %v393
    %436 = vmatprep.subr.mxu0 0.0
    %437 = vmatpush1.msra.mxu0 %v392
    %438 = vmatprep.subr.mxu0 0.0
    %439 = vmatpush1.msra.mxu0 %v391
    %440 = vmatprep.subr.mxu0 0.0
    %441 = vmatpush2.msra.mxu0 0.0
    %442 = vmatprep.subr.mxu0 0.0
    %443 = vmatpush2.msra.mxu0 0.0
    %444 = vmatprep.subr.mxu0 0.0
    %445 = vmatpush2.msra.mxu0 0.0
    %446 = vmatprep.subr.mxu0 0.0
    %447 = vmatpush2.msra.mxu0 0.0
    %448 = vmatprep.subr.mxu0 0.0
    %449 = vmatpush2.msra.mxu0 0.0
    %450 = vmatprep.subr.mxu0 0.0
    %451 = vmatpush2.msra.mxu0 0.0
    %452 = vmatprep.subr.mxu0 0.0
    %453 = vmatpush2.msra.mxu0 0.0
    %454 = vmatprep.subr.mxu0 0.0
    %455 = vmatpush2.msra.mxu0 0.0
    %456 = vmatprep.subr.mxu0 0.0
    %457 = vmatpush2.msra.mxu0 0.0
    %458 = vmatprep.subr.mxu0 0.0
    %459 = vmatpush2.msra.mxu0 0.0
    %460 = vmatprep.subr.mxu0 0.0
    %461 = vmatpush2.msra.mxu0 0.0
    %462 = vmatprep.subr.mxu0 0.0
    %463 = vmatpush2.msra.mxu0 0.0
    %464 = vmatprep.subr.mxu0 0.0
    %465 = vmatpush2.msra.mxu0 0.0
    %466 = vmatprep.subr.mxu0 0.0
    %467 = vmatpush2.msra.mxu0 0.0
    %468 = vmatprep.subr.mxu0 0.0
    %469 = vmatpush2.msra.mxu0 0.0
    %470 = vmatprep.subr.mxu0 0.0
    %471 = vmatpush2.msra.mxu0 0.0
    %472 = vmatprep.mubr.f32.mxu0 0.0
    %473 = vmatmul.mubr.f32.gmra.mxu0 %v389
    %v474 = vpop.f32.mrf.mxu0
    %v475 = vadd.f32 %v407, %v474
    %v476 = vpop.f32.mrf.mxu0
    %477 = vdwg.mxu0
    %v478 = vadd.f32 %v475, %v113
    %s479 = scalar_lea.vmem [#allocation5], 512
    %v480 = vld [vmem:[%s479] sm:$0xff]
    %v481 = vld [vmem:[%s479 + $0x8] sm:$0xff]
    %v482 = vld [vmem:[%s479 + $0x10] sm:$0xff]
    %v483 = vld [vmem:[%s479 + $0x18] sm:$0xff]
    %v484 = vld [vmem:[%s479 + $0x20] sm:$0xff]
    %v485 = vld [vmem:[%s479 + $0x28] sm:$0xff]
    %v486 = vld [vmem:[%s479 + $0x30] sm:$0xff]
    %v487 = vld [vmem:[%s479 + $0x38] sm:$0xff]
    %v488 = vld [vmem:[%s479 + $0x40] sm:$0xff]
    %v489 = vld [vmem:[%s479 + $0x48] sm:$0xff]
    %v490 = vld [vmem:[%s479 + $0x50] sm:$0xff]
    %v491 = vld [vmem:[%s479 + $0x58] sm:$0xff]
    %v492 = vld [vmem:[%s479 + $0x60] sm:$0xff]
    %v493 = vld [vmem:[%s479 + $0x68] sm:$0xff]
    %v494 = vld [vmem:[%s479 + $0x70] sm:$0xff]
    %v495 = vld [vmem:[%s479 + $0x78] sm:$0xff]
    %v496 = vld [vmem:[%s4 + $0x4] sm:$0x1]
    %497 = vmatprep.subr.mxu0 0.0
    %498 = vmatpush1.msra.mxu0 %v495
    %499 = vmatprep.subr.mxu0 0.0
    %500 = vmatpush1.msra.mxu0 %v494
    %501 = vmatprep.subr.mxu0 0.0
    %502 = vmatpush1.msra.mxu0 %v493
    %503 = vmatprep.subr.mxu0 0.0
    %504 = vmatpush1.msra.mxu0 %v492
    %505 = vmatprep.subr.mxu0 0.0
    %506 = vmatpush1.msra.mxu0 %v491
    %507 = vmatprep.subr.mxu0 0.0
    %508 = vmatpush1.msra.mxu0 %v490
    %509 = vmatprep.subr.mxu0 0.0
    %510 = vmatpush1.msra.mxu0 %v489
    %511 = vmatprep.subr.mxu0 0.0
    %512 = vmatpush1.msra.mxu0 %v488
    %513 = vmatprep.subr.mxu0 0.0
    %514 = vmatpush1.msra.mxu0 %v487
    %515 = vmatprep.subr.mxu0 0.0
    %516 = vmatpush1.msra.mxu0 %v486
    %517 = vmatprep.subr.mxu0 0.0
    %518 = vmatpush1.msra.mxu0 %v485
    %519 = vmatprep.subr.mxu0 0.0
    %520 = vmatpush1.msra.mxu0 %v484
    %521 = vmatprep.subr.mxu0 0.0
    %522 = vmatpush1.msra.mxu0 %v483
    %523 = vmatprep.subr.mxu0 0.0
    %524 = vmatpush1.msra.mxu0 %v482
    %525 = vmatprep.subr.mxu0 0.0
    %526 = vmatpush1.msra.mxu0 %v481
    %527 = vmatprep.subr.mxu0 0.0
    %528 = vmatpush1.msra.mxu0 %v480
    %529 = vmatprep.subr.mxu0 0.0
    %530 = vmatpush2.msra.mxu0 0.0
    %531 = vmatprep.subr.mxu0 0.0
    %532 = vmatpush2.msra.mxu0 0.0
    %533 = vmatprep.subr.mxu0 0.0
    %534 = vmatpush2.msra.mxu0 0.0
    %535 = vmatprep.subr.mxu0 0.0
    %536 = vmatpush2.msra.mxu0 0.0
    %537 = vmatprep.subr.mxu0 0.0
    %538 = vmatpush2.msra.mxu0 0.0
    %539 = vmatprep.subr.mxu0 0.0
    %540 = vmatpush2.msra.mxu0 0.0
    %541 = vmatprep.subr.mxu0 0.0
    %542 = vmatpush2.msra.mxu0 0.0
    %543 = vmatprep.subr.mxu0 0.0
    %544 = vmatpush2.msra.mxu0 0.0
    %545 = vmatprep.subr.mxu0 0.0
    %546 = vmatpush2.msra.mxu0 0.0
    %547 = vmatprep.subr.mxu0 0.0
    %548 = vmatpush2.msra.mxu0 0.0
    %549 = vmatprep.subr.mxu0 0.0
    %550 = vmatpush2.msra.mxu0 0.0
    %551 = vmatprep.subr.mxu0 0.0
    %552 = vmatpush2.msra.mxu0 0.0
    %553 = vmatprep.subr.mxu0 0.0
    %554 = vmatpush2.msra.mxu0 0.0
    %555 = vmatprep.subr.mxu0 0.0
    %556 = vmatpush2.msra.mxu0 0.0
    %557 = vmatprep.subr.mxu0 0.0
    %558 = vmatpush2.msra.mxu0 0.0
    %559 = vmatprep.subr.mxu0 0.0
    %560 = vmatpush2.msra.mxu0 0.0
    %561 = vmatprep.mubr.f32.mxu0 0.0
    %562 = vmatmul.mubr.f32.gmra.mxu0 %v478
    %v563 = vpop.f32.mrf.mxu0
    %v564 = vadd.f32 %v496, %v563
    %v565 = vpop.f32.mrf.mxu0
    %566 = vdwg.mxu0
    %v567 = vadd.f32 %v564, %v113
    %v568 = vld [vmem:[#allocation7] sm:$0xff]
    %v569 = vld [vmem:[#allocation7 + $0x8] sm:$0xff]
    %v570 = vld [vmem:[#allocation7 + $0x10] sm:$0xff]
    %v571 = vld [vmem:[#allocation7 + $0x18] sm:$0xff]
    %v572 = vld [vmem:[#allocation7 + $0x20] sm:$0xff]
    %v573 = vld [vmem:[#allocation7 + $0x28] sm:$0xff]
    %v574 = vld [vmem:[#allocation7 + $0x30] sm:$0xff]
    %v575 = vld [vmem:[#allocation7 + $0x38] sm:$0xff]
    %v576 = vld [vmem:[#allocation7 + $0x40] sm:$0xff]
    %v577 = vld [vmem:[#allocation7 + $0x48] sm:$0xff]
    %v578 = vld [vmem:[#allocation7 + $0x50] sm:$0xff]
    %v579 = vld [vmem:[#allocation7 + $0x58] sm:$0xff]
    %v580 = vld [vmem:[#allocation7 + $0x60] sm:$0xff]
    %v581 = vld [vmem:[#allocation7 + $0x68] sm:$0xff]
    %v582 = vld [vmem:[#allocation7 + $0x70] sm:$0xff]
    %v583 = vld [vmem:[#allocation7 + $0x78] sm:$0xff]
    %v584 = vld [vmem:[%s4 + $0x5] sm:$0x1]
    %585 = vmatprep.subr.mxu0 0.0
    %586 = vmatpush1.msra.mxu0 %v583
    %587 = vmatprep.subr.mxu0 0.0
    %588 = vmatpush1.msra.mxu0 %v582
    %589 = vmatprep.subr.mxu0 0.0
    %590 = vmatpush1.msra.mxu0 %v581
    %591 = vmatprep.subr.mxu0 0.0
    %592 = vmatpush1.msra.mxu0 %v580
    %593 = vmatprep.subr.mxu0 0.0
    %594 = vmatpush1.msra.mxu0 %v579
    %595 = vmatprep.subr.mxu0 0.0
    %596 = vmatpush1.msra.mxu0 %v578
    %597 = vmatprep.subr.mxu0 0.0
    %598 = vmatpush1.msra.mxu0 %v577
    %599 = vmatprep.subr.mxu0 0.0
    %600 = vmatpush1.msra.mxu0 %v576
    %601 = vmatprep.subr.mxu0 0.0
    %602 = vmatpush1.msra.mxu0 %v575
    %603 = vmatprep.subr.mxu0 0.0
    %604 = vmatpush1.msra.mxu0 %v574
    %605 = vmatprep.subr.mxu0 0.0
    %606 = vmatpush1.msra.mxu0 %v573
    %607 = vmatprep.subr.mxu0 0.0
    %608 = vmatpush1.msra.mxu0 %v572
    %609 = vmatprep.subr.mxu0 0.0
    %610 = vmatpush1.msra.mxu0 %v571
    %611 = vmatprep.subr.mxu0 0.0
    %612 = vmatpush1.msra.mxu0 %v570
    %613 = vmatprep.subr.mxu0 0.0
    %614 = vmatpush1.msra.mxu0 %v569
    %615 = vmatprep.subr.mxu0 0.0
    %616 = vmatpush1.msra.mxu0 %v568
    %617 = vmatprep.subr.mxu0 0.0
    %618 = vmatpush2.msra.mxu0 0.0
    %619 = vmatprep.subr.mxu0 0.0
    %620 = vmatpush2.msra.mxu0 0.0
    %621 = vmatprep.subr.mxu0 0.0
    %622 = vmatpush2.msra.mxu0 0.0
    %623 = vmatprep.subr.mxu0 0.0
    %624 = vmatpush2.msra.mxu0 0.0
    %625 = vmatprep.subr.mxu0 0.0
    %626 = vmatpush2.msra.mxu0 0.0
    %627 = vmatprep.subr.mxu0 0.0
    %628 = vmatpush2.msra.mxu0 0.0
    %629 = vmatprep.subr.mxu0 0.0
    %630 = vmatpush2.msra.mxu0 0.0
    %631 = vmatprep.subr.mxu0 0.0
    %632 = vmatpush2.msra.mxu0 0.0
    %633 = vmatprep.subr.mxu0 0.0
    %634 = vmatpush2.msra.mxu0 0.0
    %635 = vmatprep.subr.mxu0 0.0
    %636 = vmatpush2.msra.mxu0 0.0
    %637 = vmatprep.subr.mxu0 0.0
    %638 = vmatpush2.msra.mxu0 0.0
    %639 = vmatprep.subr.mxu0 0.0
    %640 = vmatpush2.msra.mxu0 0.0
    %641 = vmatprep.subr.mxu0 0.0
    %642 = vmatpush2.msra.mxu0 0.0
    %643 = vmatprep.subr.mxu0 0.0
    %644 = vmatpush2.msra.mxu0 0.0
    %645 = vmatprep.subr.mxu0 0.0
    %646 = vmatpush2.msra.mxu0 0.0
    %647 = vmatprep.subr.mxu0 0.0
    %648 = vmatpush2.msra.mxu0 0.0
    %649 = vmatprep.mubr.f32.mxu0 0.0
    %650 = vmatmul.mubr.f32.gmra.mxu0 %v567
    %v651 = vpop.f32.mrf.mxu0
    %v652 = vadd.f32 %v584, %v651
    %v653 = vpop.f32.mrf.mxu0
    %654 = vdwg.mxu0
    %655 = vst [vmem:[#allocation8] sm:$0x1] %v652
    // Predicated region
    $region38: #{shape_decoder_forward.1} parent=1 // pred_check
      _
    $region39: #{shape_decoder_forward.1} parent=1 // pred_check_branch
      %657 = sbr.rel (0) target = $region41
    $region40: #{shape_decoder_forward.1} parent=1 // pred_region
      %s659 = ssub.s32 16, 16
      %660 = vsyncadd [#allocation4], %s659
      %s662 = sshll.u32 [#allocation8], 4
      %s663 = int_to_ptr.vmem [resolvable:$true] %s662
      %665 = dma.vmem_to_hbm [thread:$0]  %s663, 16, %s6, [#allocation4]
    $region41: #{shape_decoder_forward.1} parent=1 // pred_fallthru
      _
    // Predicated region
    $region42: #{shape_decoder_forward.1} parent=1 // pred_check
      _
    $region43: #{shape_decoder_forward.1} parent=1 // pred_check_branch
      %667 = sbr.rel (0) target = $region45
    $region44: #{shape_decoder_forward.1} parent=1 // pred_region
      %s669 = ssub.s32 16, 16
      %670 = vsyncadd [#allocation10], %s669
      %s672 = sshll.u32 [#allocation9], 4
      %s673 = int_to_ptr.vmem [resolvable:$true] %s672
      %675 = dma.vmem_to_hbm [thread:$0]  %s673, 16, %s7, [#allocation10]
    $region45: #{shape_decoder_forward.1} parent=1 // pred_fallthru
      _
    // Predicated region
    $region46: #{shape_decoder_forward.1} parent=1 // pred_check
      _
    $region47: #{shape_decoder_forward.1} parent=1 // pred_check_branch
      %677 = sbr.rel (0) target = $region49
    $region48: #{shape_decoder_forward.1} parent=1 // pred_region
      %678 = dma.done [#allocation4], 16
    $region49: #{shape_decoder_forward.1} parent=1 // pred_fallthru
      _
    // Predicated region
    $region50: #{shape_decoder_forward.1} parent=1 // pred_check
      _
    $region51: #{shape_decoder_forward.1} parent=1 // pred_check_branch
      %680 = sbr.rel (0) target = $region53
    $region52: #{shape_decoder_forward.1} parent=1 // pred_region
      %681 = dma.done [#allocation10], 16
    $region53: #{shape_decoder_forward.1} parent=1 // pred_fallthru
      _
    %682 = vsyncpa [#allocation3], 1
    %683 = vsyncpa [#allocation6], 1
    %684 = vsyncpa [#allocation4], 1
    %685 = vsyncpa [#allocation10], 1

</llo_original>
